<compile_context>
chip_gen: v6e
topology: v6e:2x2x1
jax: 0.10.0
libtpu: 0.0.40
codegen_flags: <defaults>
</compile_context>

<pallas_src>
import functools

import jax
import jax.numpy as jnp
from jax import lax
from jax.experimental import pallas as pl
from jax.experimental.pallas import tpu as pltpu


_VMEM_BUDGET_BYTES = 48 * 1024 * 1024          # safe on v5e/v6e (128 MiB) and v7x (64 MiB)
_SINGLE_BUFFER_WEIGHT_BYTES = 4 * 1024 * 1024  # single-buffer the Toeplitz weight above this


# ---------------------------------------------------------------------------
# Kernel
# ---------------------------------------------------------------------------
def _preprocess_kernel(x_ref, w_ref, bias_ref, o_ref, *, h):
    # x_ref:    (M, W*Cin)          M = batch_block*H rows, channels fused into lanes
    # w_ref:    (3, W*Cin, W*Cout)  per-ky column-Toeplitz weights (kx taps, column
    #                               replicate padding and BN scale folded in)
    # bias_ref: (1, W*Cout)         folded BN bias, pre-tiled across W (lane-aligned)
    # o_ref:    (M, W*Cout)         lane-dense output
    m, wcout = o_ref.shape

    x = x_ref[...]                                  # (M, W*Cin), compute dtype
    bias = bias_ref[...]                            # (1, W*Cout), f32

    # One MXU matmul per kernel row ky for the WHOLE block (M rows): each already sums
    # over kx and Cin.  f32 accumulation regardless of operand dtype.
    t0 = jnp.dot(x, w_ref[0], preferred_element_type=jnp.float32)   # ky = 0 (row above)
    t1 = jnp.dot(x, w_ref[1], preferred_element_type=jnp.float32)   # ky = 1 (same row)
    t2 = jnp.dot(x, w_ref[2], preferred_element_type=jnp.float32)   # ky = 2 (row below)

    # Row replicate padding on the (linear) matmul results.  `row` is the row index
    # WITHIN each image, so the mask also fixes up the image seams inside the fused
    # M axis (the row rolled in from the neighbouring image is overwritten).
    row = lax.broadcasted_iota(jnp.int32, (m, wcout), 0) % h        # 2-D iota (TPU req.)
    #   ky=0 taps read input row clamp(r-1, 0)    -> shift results down 1, replicate row 0
    c0 = jnp.where(row == 0, t0, pltpu.roll(t0, shift=1, axis=0))
    #   ky=2 taps read input row clamp(r+1, H-1)  -> shift results up 1, replicate row H-1
    c2 = jnp.where(row == h - 1, t2, pltpu.roll(t2, shift=m - 1, axis=0))

    out = c0 + t1 + c2 + bias                       # conv + folded BatchNorm (eval)
    o_ref[...] = jnp.maximum(out, 0.0).astype(o_ref.dtype)          # ReLU


# ---------------------------------------------------------------------------
# Parameter prep (done once per parameter set in a real model)
# ---------------------------------------------------------------------------
def _fold_bn_and_build_weights(weight_oihw, gamma, beta, running_mean,
                               running_var, eps, W):
    """Fold BN (eval) into the conv weights and build the per-ky column-Toeplitz
    weight of shape (3, W*Cin, W*Cout).  Column replicate padding is folded in via
    index clamping."""
    Cout, Cin, kh, kw = weight_oihw.shape
    assert (kh, kw) == (3, 3)

    scale = gamma / jnp.sqrt(running_var + eps)            # (Cout,)
    bias = beta - running_mean * scale                     # (Cout,)

    w_hwio = jnp.transpose(weight_oihw, (2, 3, 1, 0))      # OIHW -> HWIO (3,3,Cin,Cout)
    w_s = (w_hwio * scale[None, None, None, :]).astype(jnp.float32)

    wk = jnp.zeros((3, W * Cin, W * Cout), dtype=jnp.float32)
    for kx in range(3):
        for w in range(W):
            q = min(max(w + kx - 1, 0), W - 1)             # column replicate padding
            wk = wk.at[:, q * Cin:(q + 1) * Cin,
                       w * Cout:(w + 1) * Cout].add(w_s[:, kx])

    bias_tiled = jnp.tile(bias.astype(jnp.float32), W).reshape(1, W * Cout)
    return wk, bias_tiled


# ---------------------------------------------------------------------------
# Block-size heuristic
# ---------------------------------------------------------------------------
def _has_two_tensorcores():
    try:
        kind = jax.devices()[0].device_kind.lower()
    except Exception:
        return False
    return ("v7" in kind) or ("v4" in kind)


def _pick_batch_block(N, H, W, Cin, Cout, compute_dtype, weight_bytes, requested):
    in_bytes_per_img = H * W * Cin * jnp.dtype(compute_dtype).itemsize
    out_bytes_per_img = H * W * Cout * 4                   # f32 output
    # Weight conservatively counted double-buffered; 2 MiB margin for internal scratch.
    avail = _VMEM_BUDGET_BYTES - 2 * weight_bytes - (2 << 20)
    max_by_vmem = max(1, int(avail // (2 * (in_bytes_per_img + out_bytes_per_img))))

    if requested is not None:
        bb = max(1, min(int(requested), max_by_vmem, N))
    else:
        # Single-TC chips (v5e/v6e): one big grid step (per-step overhead dominates at
        # small blocks).  v7x: keep >= 2 steps so both TensorCores get work.
        target_steps = 2 if _has_two_tensorcores() else 1
        bb = max(1, min(pl.cdiv(N, target_steps), max_by_vmem, N))

    # Sublane alignment: block row count (bb*H) must be a multiple of 8 unless the
    # block covers the whole (padded) array.
    while (bb * H) % 8 != 0 and bb < N:
        bb += 1
    return bb


# ---------------------------------------------------------------------------
# Wrappers
# ---------------------------------------------------------------------------
def preprocess_pallas_nhwc(x_nhwc, weight_oihw, gamma, beta, running_mean,
                           running_var, eps=1e-5, batch_block=None,
                           compute_dtype=jnp.bfloat16):
    """Forward of Preprocess, channels-last. x_nhwc: (N, H, W, Cin) -> (N, H, W, Cout)."""
    N, H, W, Cin = x_nhwc.shape
    Cout = weight_oihw.shape[0]

    wk, bias_tiled = _fold_bn_and_build_weights(
        weight_oihw, gamma, beta, running_mean, running_var, eps, W)
    wk = wk.astype(compute_dtype)
    weight_bytes = wk.size * wk.dtype.itemsize

    bb = _pick_batch_block(N, H, W, Cin, Cout, compute_dtype, weight_bytes, batch_block)
    n_pad = pl.cdiv(N, bb) * bb
    grid = n_pad // bb

    # Fuse channels into lanes and batch*H into the sublane axis (contiguous reshape,
    # no HBM padding pass).
    x_rows = x_nhwc.reshape(N * H, W * Cin).astype(compute_dtype)
    if n_pad != N:
        x_rows = jnp.pad(x_rows, ((0, (n_pad - N) * H), (0, 0)))

    if weight_bytes >= _SINGLE_BUFFER_WEIGHT_BYTES:
        # Constant index_map -> no pipelining needed; halve weight VMEM (matters first
        # on v7x's 64 MiB VMEM at large W).
        w_spec = pl.BlockSpec((3, W * Cin, W * Cout), lambda n: (0, 0, 0),
                              pipeline_mode=pl.Buffered(1))
        b_spec = pl.BlockSpec((1, W * Cout), lambda n: (0, 0),
                              pipeline_mode=pl.Buffered(1))
    else:
        w_spec = pl.BlockSpec((3, W * Cin, W * Cout), lambda n: (0, 0, 0))
        b_spec = pl.BlockSpec((1, W * Cout), lambda n: (0, 0))

    out_rows = pl.pallas_call(
        functools.partial(_preprocess_kernel, h=H),
        out_shape=jax.ShapeDtypeStruct((n_pad * H, W * Cout), jnp.float32),
        grid_spec=pltpu.PrefetchScalarGridSpec(
            num_scalar_prefetch=0,
            grid=(grid,),
            in_specs=[
                pl.BlockSpec((bb * H, W * Cin), lambda n: (n, 0)),
                w_spec,
                b_spec,
            ],
            out_specs=pl.BlockSpec((bb * H, W * Cout), lambda n: (n, 0)),
        ),
        compiler_params=pltpu.CompilerParams(
            dimension_semantics=("parallel",),
            vmem_limit_bytes=_VMEM_BUDGET_BYTES),
    )(x_rows, wk, bias_tiled)

    return out_rows[: N * H].reshape(N, H, W, Cout)


def preprocess_pallas(x_nchw, weight_oihw, gamma, beta, running_mean,
                      running_var, eps=1e-5, batch_block=None,
                      compute_dtype=jnp.bfloat16):
    """NCHW interface matching the PyTorch module: (N, Cin, H, W) -> (N, Cout, H, W).
    NOTE: each boundary transpose is a full extra HBM pass; prefer
    preprocess_pallas_nhwc if the surrounding model is channels-last."""
    x_nhwc = jnp.transpose(x_nchw, (0, 2, 3, 1))
    y = preprocess_pallas_nhwc(x_nhwc, weight_oihw, gamma, beta, running_mean,
                               running_var, eps=eps, batch_block=batch_block,
                               compute_dtype=compute_dtype)
    return jnp.transpose(y, (0, 3, 1, 2))


# ---------------------------------------------------------------------------
# Pure-JAX reference (same semantics as the PyTorch module, BN in eval)
# ---------------------------------------------------------------------------
def preprocess_ref(x_nchw, weight_oihw, gamma, beta, running_mean,
                   running_var, eps=1e-5):
    x_nhwc = jnp.transpose(x_nchw, (0, 2, 3, 1))
    x_pad = jnp.pad(x_nhwc, ((0, 0), (1, 1), (1, 1), (0, 0)), mode="edge")
    w_hwio = jnp.transpose(weight_oihw, (2, 3, 1, 0))
    y = lax.conv_general_dilated(
        x_pad, w_hwio, window_strides=(1, 1), padding="VALID",
        dimension_numbers=("NHWC", "HWIO", "NHWC"))
    scale = gamma / jnp.sqrt(running_var + eps)
    bias = beta - running_mean * scale
    y = y * scale.reshape(1, 1, 1, -1) + bias.reshape(1, 1, 1, -1)
    y = jnp.maximum(y, 0.0)
    return jnp.transpose(y, (0, 3, 1, 2))


if __name__ == "__main__":
    # Small shapes consistent with Preprocess(inplanes=4, planes=8)
    N, Cin, H, W = 2, 4, 16, 16
    Cout = 8

    key = jax.random.PRNGKey(0)
    kx, kw, kg, kb, km, kv = jax.random.split(key, 6)

    x = jax.random.normal(kx, (N, Cin, H, W), dtype=jnp.float32)
    weight = jax.random.normal(kw, (Cout, Cin, 3, 3), dtype=jnp.float32) * 0.1
    gamma = 1.0 + 0.1 * jax.random.normal(kg, (Cout,), dtype=jnp.float32)
    beta = 0.1 * jax.random.normal(kb, (Cout,), dtype=jnp.float32)
    running_mean = 0.1 * jax.random.normal(km, (Cout,), dtype=jnp.float32)
    running_var = jnp.abs(1.0 + 0.1 * jax.random.normal(kv, (Cout,),
                                                        dtype=jnp.float32))

    ref = preprocess_ref(x, weight, gamma, beta, running_mean, running_var)

    # 1) f32 compute path: exact-semantics check against the reference.
    f32_fn = jax.jit(functools.partial(preprocess_pallas, compute_dtype=jnp.float32))
    out_f32 = jax.block_until_ready(
        f32_fn(x, weight, gamma, beta, running_mean, running_var))
    assert out_f32.shape == (N, Cout, H, W)
    assert jnp.allclose(out_f32, ref, atol=1e-3, rtol=1e-3), "f32 mismatch vs reference"

    # 2) Default bf16 MXU-operand path (f32 accumulation): bf16-appropriate tolerance.
    bf16_fn = jax.jit(preprocess_pallas)
    out_bf16 = jax.block_until_ready(
        bf16_fn(x, weight, gamma, beta, running_mean, running_var))
    assert out_bf16.shape == (N, Cout, H, W)
    assert jnp.allclose(out_bf16, ref, atol=3e-2, rtol=3e-2), "bf16 mismatch vs reference"

    print("KERNEL_OK")
</pallas_src>

<mosaic_0001>
module attributes {stable_mosaic.version = 11 : i64} {
  func.func @_preprocess_kernel(%arg0: i32, %arg1: memref<32x64xf32, #tpu.memory_space<vmem>>, %arg2: memref<3x64x128xf32, #tpu.memory_space<vmem>>, %arg3: memref<1x128xf32, #tpu.memory_space<vmem>>, %arg4: memref<32x128xf32, #tpu.memory_space<vmem>>) attributes {dimension_semantics = [#tpu.dimension_semantics<parallel>], iteration_bounds = array<i64: 1>, scalar_prefetch = 0 : i64, scratch_operands = 0 : i64, tpu.core_type = #tpu.core_type<tc>, window_params = [{transform_indices = @transform_0, window_bounds = array<i64: 32, 64>}, {pipeline_mode = #tpu.pipeline_mode<synchronous>, transform_indices = @transform_1, window_bounds = array<i64: 3, 64, 128>}, {pipeline_mode = #tpu.pipeline_mode<synchronous>, transform_indices = @transform_2, window_bounds = array<i64: 1, 128>}, {transform_indices = @transform_3, window_bounds = array<i64: 32, 128>}]} {
    %c0 = arith.constant 0 : index
    %c0_0 = arith.constant 0 : index
    %0 = vector.load %arg1[%c0, %c0_0] : memref<32x64xf32, #tpu.memory_space<vmem>>, vector<32x64xf32>
    %c0_1 = arith.constant 0 : index
    %c0_2 = arith.constant 0 : index
    %1 = vector.load %arg3[%c0_1, %c0_2] : memref<1x128xf32, #tpu.memory_space<vmem>>, vector<1x128xf32>
    %c0_3 = arith.constant 0 : index
    %c0_4 = arith.constant 0 : index
    %c0_5 = arith.constant 0 : index
    %2 = vector.load %arg2[%c0_3, %c0_4, %c0_5] : memref<3x64x128xf32, #tpu.memory_space<vmem>>, vector<1x64x128xf32>
    %3 = vector.shape_cast %2 : vector<1x64x128xf32> to vector<64x128xf32>
    %cst = arith.constant dense<0.000000e+00> : vector<32x128xf32>
    %4 = tpu.matmul %0, %3, %cst {dimension_numbers = #tpu.dot_dimension_numbers<[1], [0], [0], [1], [0, 0, 1, 1], [], []>} : vector<32x64xf32>, vector<64x128xf32>, vector<32x128xf32> -> vector<32x128xf32>
    %c1 = arith.constant 1 : index
    %c0_6 = arith.constant 0 : index
    %c0_7 = arith.constant 0 : index
    %5 = vector.load %arg2[%c1, %c0_6, %c0_7] : memref<3x64x128xf32, #tpu.memory_space<vmem>>, vector<1x64x128xf32>
    %6 = vector.shape_cast %5 : vector<1x64x128xf32> to vector<64x128xf32>
    %cst_8 = arith.constant dense<0.000000e+00> : vector<32x128xf32>
    %7 = tpu.matmul %0, %6, %cst_8 {dimension_numbers = #tpu.dot_dimension_numbers<[1], [0], [0], [1], [0, 0, 1, 1], [], []>} : vector<32x64xf32>, vector<64x128xf32>, vector<32x128xf32> -> vector<32x128xf32>
    %c2 = arith.constant 2 : index
    %c0_9 = arith.constant 0 : index
    %c0_10 = arith.constant 0 : index
    %8 = vector.load %arg2[%c2, %c0_9, %c0_10] : memref<3x64x128xf32, #tpu.memory_space<vmem>>, vector<1x64x128xf32>
    %9 = vector.shape_cast %8 : vector<1x64x128xf32> to vector<64x128xf32>
    %cst_11 = arith.constant dense<0.000000e+00> : vector<32x128xf32>
    %10 = tpu.matmul %0, %9, %cst_11 {dimension_numbers = #tpu.dot_dimension_numbers<[1], [0], [0], [1], [0, 0, 1, 1], [], []>} : vector<32x64xf32>, vector<64x128xf32>, vector<32x128xf32> -> vector<32x128xf32>
    %11 = tpu.iota {dimensions = array<i32: 0>} : vector<32x128xi32>
    %c16_i32 = arith.constant 16 : i32
    %c0_i32 = arith.constant 0 : i32
    %12 = arith.cmpi eq, %c16_i32, %c0_i32 : i32
    %c1_i32 = arith.constant 1 : i32
    %13 = arith.select %12, %c1_i32, %c16_i32 : i32
    %14 = vector.broadcast %13 : i32 to vector<32x128xi32>
    %15 = arith.remsi %11, %14 : vector<32x128xi32>
    %c0_i32_12 = arith.constant 0 : i32
    %16 = vector.broadcast %c0_i32_12 : i32 to vector<32x128xi32>
    %17 = arith.cmpi ne, %15, %16 : vector<32x128xi32>
    %c0_i32_13 = arith.constant 0 : i32
    %18 = vector.broadcast %c0_i32_13 : i32 to vector<32x128xi32>
    %19 = arith.cmpi slt, %15, %18 : vector<32x128xi32>
    %c0_i32_14 = arith.constant 0 : i32
    %20 = arith.cmpi slt, %13, %c0_i32_14 : i32
    %21 = vector.broadcast %20 : i1 to vector<32x128xi1>
    %22 = vector.broadcast %21 : vector<32x128xi1> to vector<32x128xi1>
    %23 = arith.xori %19, %22 : vector<32x128xi1>
    %24 = arith.andi %23, %17 : vector<32x128xi1>
    %25 = vector.broadcast %13 : i32 to vector<32x128xi32>
    %26 = arith.addi %15, %25 : vector<32x128xi32>
    %27 = arith.select %24, %26, %15 : vector<32x128xi1>, vector<32x128xi32>
    %c0_i32_15 = arith.constant 0 : i32
    %28 = vector.broadcast %c0_i32_15 : i32 to vector<32x128xi32>
    %29 = arith.cmpi eq, %27, %28 : vector<32x128xi32>
    %c1_i32_16 = arith.constant 1 : i32
    %30 = tpu.dynamic_rotate %4 by %c1_i32_16 dim 0 : vector<32x128xf32>, i32 -> vector<32x128xf32>
    %31 = arith.select %29, %4, %30 : vector<32x128xi1>, vector<32x128xf32>
    %c15_i32 = arith.constant 15 : i32
    %32 = vector.broadcast %c15_i32 : i32 to vector<32x128xi32>
    %33 = arith.cmpi eq, %27, %32 : vector<32x128xi32>
    %c31_i32 = arith.constant 31 : i32
    %34 = tpu.dynamic_rotate %10 by %c31_i32 dim 0 : vector<32x128xf32>, i32 -> vector<32x128xf32>
    %35 = arith.select %33, %10, %34 : vector<32x128xi1>, vector<32x128xf32>
    %36 = arith.addf %31, %7 : vector<32x128xf32>
    %37 = arith.addf %36, %35 : vector<32x128xf32>
    %38 = vector.broadcast %1 : vector<1x128xf32> to vector<32x128xf32>
    %39 = arith.addf %37, %38 : vector<32x128xf32>
    %cst_17 = arith.constant 0.000000e+00 : f32
    %40 = vector.broadcast %cst_17 : f32 to vector<32x128xf32>
    %41 = arith.maximumf %39, %40 : vector<32x128xf32>
    %c0_18 = arith.constant 0 : index
    %c0_19 = arith.constant 0 : index
    %42 = vector.load %arg4[%c0_18, %c0_19] : memref<32x128xf32, #tpu.memory_space<vmem>>, vector<32x128xf32>
    tpu.vector_store %arg4[%c0_18, %c0_19], %41 {strides = array<i32>} : memref<32x128xf32, #tpu.memory_space<vmem>>, vector<32x128xf32>,
    return
  }
  func.func @transform_0(%arg0: i32) -> (i32, i32) {
    %c0_i32 = arith.constant 0 : i32
    %c0_i32_0 = arith.constant 0 : i32
    return %arg0, %c0_i32 : i32, i32
  }
  func.func @transform_1(%arg0: i32) -> (i32, i32, i32) {
    %c0_i32 = arith.constant 0 : i32
    %c0_i32_0 = arith.constant 0 : i32
    %c0_i32_1 = arith.constant 0 : i32
    %c0_i32_2 = arith.constant 0 : i32
    return %c0_i32, %c0_i32_0, %c0_i32_1 : i32, i32, i32
  }
  func.func @transform_2(%arg0: i32) -> (i32, i32) {
    %c0_i32 = arith.constant 0 : i32
    %c0_i32_0 = arith.constant 0 : i32
    %c0_i32_1 = arith.constant 0 : i32
    return %c0_i32, %c0_i32_0 : i32, i32
  }
  func.func @transform_3(%arg0: i32) -> (i32, i32) {
    %c0_i32 = arith.constant 0 : i32
    %c0_i32_0 = arith.constant 0 : i32
    return %arg0, %c0_i32 : i32, i32
  }
}

</mosaic_0001>

<llo_original>
// kernel: tile.8
$region0: #{tile.8}
  #allocation0 [shape = 's32[1]{0}', space=sflag, size = 0x4, scoped, tag = 'scoped memory for tile.8']
  %s0 = inlined_call_operand.vmem [shape: f32[8], index: 0, kind: input, shape index: {}]
  %s1 = inlined_call_operand.vmem [shape: f32[16,8], index: 1, kind: output, shape index: {}]
  // Predicated region
  $region2: #{tile.8} parent=0 // pred_check
    _
  $region3: #{tile.8} parent=0 // pred_check_branch
    %3 = sbr.rel (0) target = $region5
  $region4: #{tile.8} parent=0 // pred_region
    _
  $region5: #{tile.8} parent=0 // pred_fallthru
    _
  %v4 = vld [vmem:[%s0] ss:$0 sm:$0xff]
  %5 = vst [vmem:[%s1] sm:$0xff] %v4
  %s6 = scalar_lea.vmem %s1, 8
  %7 = vst [vmem:[%s6] sm:$0xff] %v4

// kernel: tile.9
$region0: #{tile.9}
  %s0 = inlined_call_operand.vmem [shape: f32[16,8], index: 0, kind: input, shape index: {}]
  %s1 = inlined_call_operand.vmem [shape: f32[1,128], index: 1, kind: output, shape index: {}]
  $region1: #{tile.9} parent=0
    #allocation0 [shape = 'u8[4096]{0}', space=vmem, size = 0x1000, scoped, tag = 'scoped mem for output reshape']
    %v2 = vld [vmem:[%s0] sm:$0x1]
    %vm3 = vcmask 64512
    %4 = vst.msk [vmem:[#allocation0] sm:$0x1] %vm3, %v2
    %s5 = scalar_lea.vmem %s0, 15
    %v6 = vld [vmem:[%s5] sm:$0x1]
    %7 = vrot.lane.b32.xlu0 %v6, 120
    %v8 = vpop.permute.xlu0 %7
    %vm9 = vcmask 1048512
    %10 = vst.msk [vmem:[#allocation0] sm:$0x1] %vm9, %v8
    %s11 = scalar_lea.vmem %s0, 14
    %v12 = vld [vmem:[%s11] sm:$0x1]
    %13 = vrot.lane.b32.xlu0 %v12, 112
    %v14 = vpop.permute.xlu0 %13
    %vm15 = vcmask 982912
    %16 = vst.msk [vmem:[#allocation0] sm:$0x1] %vm15, %v14
    %s17 = scalar_lea.vmem %s0, 13
    %v18 = vld [vmem:[%s17] sm:$0x1]
    %19 = vrot.lane.b32.xlu0 %v18, 104
    %v20 = vpop.permute.xlu0 %19
    %vm21 = vcmask 917312
    %22 = vst.msk [vmem:[#allocation0] sm:$0x1] %vm21, %v20
    %s23 = scalar_lea.vmem %s0, 12
    %v24 = vld [vmem:[%s23] sm:$0x1]
    %25 = vrot.lane.b32.xlu0 %v24, 96
    %v26 = vpop.permute.xlu0 %25
    %vm27 = vcmask 851712
    %28 = vst.msk [vmem:[#allocation0] sm:$0x1] %vm27, %v26
    %s29 = scalar_lea.vmem %s0, 11
    %v30 = vld [vmem:[%s29] sm:$0x1]
    %31 = vrot.lane.b32.xlu0 %v30, 88
    %v32 = vpop.permute.xlu0 %31
    %vm33 = vcmask 786112
    %34 = vst.msk [vmem:[#allocation0] sm:$0x1] %vm33, %v32
    %s35 = scalar_lea.vmem %s0, 10
    %v36 = vld [vmem:[%s35] sm:$0x1]
    %37 = vrot.lane.b32.xlu0 %v36, 80
    %v38 = vpop.permute.xlu0 %37
    %vm39 = vcmask 720512
    %40 = vst.msk [vmem:[#allocation0] sm:$0x1] %vm39, %v38
    %s41 = scalar_lea.vmem %s0, 9
    %v42 = vld [vmem:[%s41] sm:$0x1]
    %43 = vrot.lane.b32.xlu0 %v42, 72
    %v44 = vpop.permute.xlu0 %43
    %vm45 = vcmask 654912
    %46 = vst.msk [vmem:[#allocation0] sm:$0x1] %vm45, %v44
    %s47 = scalar_lea.vmem %s0, 8
    %v48 = vld [vmem:[%s47] sm:$0x1]
    %49 = vrot.lane.b32.xlu0 %v48, 64
    %v50 = vpop.permute.xlu0 %49
    %vm51 = vcmask 589312
    %52 = vst.msk [vmem:[#allocation0] sm:$0x1] %vm51, %v50
    %s53 = scalar_lea.vmem %s0, 7
    %v54 = vld [vmem:[%s53] sm:$0x1]
    %55 = vrot.lane.b32.xlu0 %v54, 56
    %v56 = vpop.permute.xlu0 %55
    %vm57 = vcmask 523712
    %58 = vst.msk [vmem:[#allocation0] sm:$0x1] %vm57, %v56
    %s59 = scalar_lea.vmem %s0, 6
    %v60 = vld [vmem:[%s59] sm:$0x1]
    %61 = vrot.lane.b32.xlu0 %v60, 48
    %v62 = vpop.permute.xlu0 %61
    %vm63 = vcmask 458112
    %64 = vst.msk [vmem:[#allocation0] sm:$0x1] %vm63, %v62
    %s65 = scalar_lea.vmem %s0, 5
    %v66 = vld [vmem:[%s65] sm:$0x1]
    %67 = vrot.lane.b32.xlu0 %v66, 40
    %v68 = vpop.permute.xlu0 %67
    %vm69 = vcmask 392512
    %70 = vst.msk [vmem:[#allocation0] sm:$0x1] %vm69, %v68
    %s71 = scalar_lea.vmem %s0, 4
    %v72 = vld [vmem:[%s71] sm:$0x1]
    %73 = vrot.lane.b32.xlu0 %v72, 32
    %v74 = vpop.permute.xlu0 %73
    %vm75 = vcmask 326912
    %76 = vst.msk [vmem:[#allocation0] sm:$0x1] %vm75, %v74
    %s77 = scalar_lea.vmem %s0, 3
    %v78 = vld [vmem:[%s77] sm:$0x1]
    %79 = vrot.lane.b32.xlu0 %v78, 24
    %v80 = vpop.permute.xlu0 %79
    %vm81 = vcmask 261312
    %82 = vst.msk [vmem:[#allocation0] sm:$0x1] %vm81, %v80
    %s83 = scalar_lea.vmem %s0, 2
    %v84 = vld [vmem:[%s83] sm:$0x1]
    %85 = vrot.lane.b32.xlu0 %v84, 16
    %v86 = vpop.permute.xlu0 %85
    %vm87 = vcmask 195712
    %88 = vst.msk [vmem:[#allocation0] sm:$0x1] %vm87, %v86
    %s89 = scalar_lea.vmem %s0, 1
    %v90 = vld [vmem:[%s89] sm:$0x1]
    %91 = vrot.lane.b32.xlu0 %v90, 8
    %v92 = vpop.permute.xlu0 %91
    %vm93 = vcmask 130112
    %94 = vst.msk [vmem:[#allocation0] sm:$0x1] %vm93, %v92
    %s96 = sshll.u32 1, 1
    %s97 = ssub.s32 %s96, 1
    %v99 = vld [vmem:[#allocation0] sm:%s97]
    %s100 = sshll.u32 1, 1
    %s101 = ssub.s32 %s100, 1
    %102 = vst [vmem:[%s1] sm:%s101] %v99

// kernel: preprocess_pallas.1
$region0: #{preprocess_pallas.1}
  #allocation0 [shape = 'u32[]', space=smem, size = 0x4, offset = 0x4, fixed_abs, tag = 'smem constant byte address 0x4 - core index']
  #allocation1 [shape = 'u32[144,128]{1,0:T(1,128)}', space=vmem, size = 0x12000, scoped, tag = 'internal scratch']
  %s0 = inlined_call_operand.vmem [shape: f32[32,64], index: 0, kind: input, shape index: {}]
  %s1 = inlined_call_operand.vmem [shape: f32[3,64,128], index: 1, kind: input, shape index: {}]
  %s2 = inlined_call_operand.vmem [shape: f32[1,128], index: 2, kind: input, shape index: {}]
  %s3 = inlined_call_operand.vmem [shape: f32[32,128], index: 3, kind: output, shape index: {}]
  %s4 = sld [smem:[#allocation0]]
  $region22: #{preprocess_pallas.1} parent=0
    _
  %s6 = ssub.s32 1, %s4
  %s7 = scalar_select 0, %s6, %s4
  // Predicated region
  $region2: #{preprocess_pallas.1} parent=0 // pred_check
    _
  $region3: #{preprocess_pallas.1} parent=0 // pred_check_branch
    %9 = sbr.rel (0) target = $region5
  $region4: #{preprocess_pallas.1} parent=0 // pred_region
    _
  $region5: #{preprocess_pallas.1} parent=0 // pred_fallthru
    _
  // Predicated region
  $region6: #{preprocess_pallas.1} parent=0 // pred_check
    _
  $region7: #{preprocess_pallas.1} parent=0 // pred_check_branch
    %11 = sbr.rel (0) target = $region9
  $region8: #{preprocess_pallas.1} parent=0 // pred_region
    _
  $region9: #{preprocess_pallas.1} parent=0 // pred_fallthru
    _
  // Predicated region
  $region10: #{preprocess_pallas.1} parent=0 // pred_check
    _
  $region11: #{preprocess_pallas.1} parent=0 // pred_check_branch
    %13 = sbr.rel (0) target = $region13
  $region12: #{preprocess_pallas.1} parent=0 // pred_region
    _
  $region13: #{preprocess_pallas.1} parent=0 // pred_fallthru
    _
  %v14 = vld [vmem:[%s0] sm:$0xff]
  %v15 = vld [vmem:[%s0 + $0x8] sm:$0xff]
  %v16 = vld [vmem:[%s0 + $0x10] sm:$0xff]
  %v17 = vld [vmem:[%s0 + $0x18] sm:$0xff]
  %v18 = vld [vmem:[%s2] sm:$0x1]
  %v19 = vld [vmem:[%s1] sm:$0xff]
  %v20 = vld [vmem:[%s1 + $0x8] sm:$0xff]
  %v21 = vld [vmem:[%s1 + $0x10] sm:$0xff]
  %v22 = vld [vmem:[%s1 + $0x18] sm:$0xff]
  %v23 = vld [vmem:[%s1 + $0x20] sm:$0xff]
  %v24 = vld [vmem:[%s1 + $0x28] sm:$0xff]
  %v25 = vld [vmem:[%s1 + $0x30] sm:$0xff]
  %v26 = vld [vmem:[%s1 + $0x38] sm:$0xff]
  %vm27 = vcmask 523264
  %v29 = vsel %vm27, %v14, 0
  %v32 = vsel %vm27, %v15, 0
  %v35 = vsel %vm27, %v16, 0
  %v38 = vsel %vm27, %v17, 0
  %40 = vmatprep.subr.mxu0 0.0
  %41 = vmatpush1.msra.mxu0 0.0
  %42 = vmatprep.subr.mxu0 0.0
  %43 = vmatpush1.msra.mxu0 0.0
  %44 = vmatprep.subr.mxu0 0.0
  %45 = vmatpush1.msra.mxu0 0.0
  %46 = vmatprep.subr.mxu0 0.0
  %47 = vmatpush1.msra.mxu0 0.0
  %48 = vmatprep.subr.mxu0 0.0
  %49 = vmatpush1.msra.mxu0 0.0
  %50 = vmatprep.subr.mxu0 0.0
  %51 = vmatpush1.msra.mxu0 0.0
  %52 = vmatprep.subr.mxu0 0.0
  %53 = vmatpush1.msra.mxu0 0.0
  %54 = vmatprep.subr.mxu0 0.0
  %55 = vmatpush1.msra.mxu0 0.0
  %56 = vmatprep.subr.mxu0 0.0
  %57 = vmatpush1.msra.mxu0 %v26
  %58 = vmatprep.subr.mxu0 0.0
  %59 = vmatpush1.msra.mxu0 %v25
  %60 = vmatprep.subr.mxu0 0.0
  %61 = vmatpush1.msra.mxu0 %v24
  %62 = vmatprep.subr.mxu0 0.0
  %63 = vmatpush1.msra.mxu0 %v23
  %64 = vmatprep.subr.mxu0 0.0
  %65 = vmatpush1.msra.mxu0 %v22
  %66 = vmatprep.subr.mxu0 0.0
  %67 = vmatpush1.msra.mxu0 %v21
  %68 = vmatprep.subr.mxu0 0.0
  %69 = vmatpush1.msra.mxu0 %v20
  %70 = vmatprep.subr.mxu0 0.0
  %71 = vmatpush1.msra.mxu0 %v19
  %72 = vmatprep.subr.mxu0 0.0
  %73 = vmatpush2.msra.mxu0 0.0
  %74 = vmatprep.subr.mxu0 0.0
  %75 = vmatpush2.msra.mxu0 0.0
  %76 = vmatprep.subr.mxu0 0.0
  %77 = vmatpush2.msra.mxu0 0.0
  %78 = vmatprep.subr.mxu0 0.0
  %79 = vmatpush2.msra.mxu0 0.0
  %80 = vmatprep.subr.mxu0 0.0
  %81 = vmatpush2.msra.mxu0 0.0
  %82 = vmatprep.subr.mxu0 0.0
  %83 = vmatpush2.msra.mxu0 0.0
  %84 = vmatprep.subr.mxu0 0.0
  %85 = vmatpush2.msra.mxu0 0.0
  %86 = vmatprep.subr.mxu0 0.0
  %87 = vmatpush2.msra.mxu0 0.0
  %88 = vmatprep.subr.mxu0 0.0
  %89 = vmatpush2.msra.mxu0 0.0
  %90 = vmatprep.subr.mxu0 0.0
  %91 = vmatpush2.msra.mxu0 0.0
  %92 = vmatprep.subr.mxu0 0.0
  %93 = vmatpush2.msra.mxu0 0.0
  %94 = vmatprep.subr.mxu0 0.0
  %95 = vmatpush2.msra.mxu0 0.0
  %96 = vmatprep.subr.mxu0 0.0
  %97 = vmatpush2.msra.mxu0 0.0
  %98 = vmatprep.subr.mxu0 0.0
  %99 = vmatpush2.msra.mxu0 0.0
  %100 = vmatprep.subr.mxu0 0.0
  %101 = vmatpush2.msra.mxu0 0.0
  %102 = vmatprep.subr.mxu0 0.0
  %103 = vmatpush2.msra.mxu0 0.0
  %104 = vmatprep.mubr.f32.mxu0 0.0
  %105 = vmatmul.mubr.f32.gmra.mxu0 %v29
  %v106 = vpop.f32.mrf.mxu0
  %v107 = vadd.f32 0.0, %v106
  %v108 = vpop.f32.mrf.mxu0
  %109 = vmatprep.mubr.f32.mxu0 0.0
  %110 = vmatmul.mubr.f32.gmra.mxu0 %v32
  %v111 = vpop.f32.mrf.mxu0
  %v112 = vadd.f32 0.0, %v111
  %v113 = vpop.f32.mrf.mxu0
  %114 = vmatprep.mubr.f32.mxu0 0.0
  %115 = vmatmul.mubr.f32.gmra.mxu0 %v35
  %v116 = vpop.f32.mrf.mxu0
  %v117 = vadd.f32 0.0, %v116
  %v118 = vpop.f32.mrf.mxu0
  %119 = vmatprep.mubr.f32.mxu0 0.0
  %120 = vmatmul.mubr.f32.gmra.mxu0 %v38
  %v121 = vpop.f32.mrf.mxu0
  %v122 = vadd.f32 0.0, %v121
  %v123 = vpop.f32.mrf.mxu0
  %124 = vdwg.mxu0
  %s125 = scalar_lea.vmem %s1, 64
  %v126 = vld [vmem:[%s125] sm:$0xff]
  %v127 = vld [vmem:[%s125 + $0x8] sm:$0xff]
  %v128 = vld [vmem:[%s125 + $0x10] sm:$0xff]
  %v129 = vld [vmem:[%s125 + $0x18] sm:$0xff]
  %v130 = vld [vmem:[%s125 + $0x20] sm:$0xff]
  %v131 = vld [vmem:[%s125 + $0x28] sm:$0xff]
  %v132 = vld [vmem:[%s125 + $0x30] sm:$0xff]
  %v133 = vld [vmem:[%s125 + $0x38] sm:$0xff]
  %134 = vmatprep.subr.mxu0 0.0
  %135 = vmatpush1.msra.mxu0 0.0
  %136 = vmatprep.subr.mxu0 0.0
  %137 = vmatpush1.msra.mxu0 0.0
  %138 = vmatprep.subr.mxu0 0.0
  %139 = vmatpush1.msra.mxu0 0.0
  %140 = vmatprep.subr.mxu0 0.0
  %141 = vmatpush1.msra.mxu0 0.0
  %142 = vmatprep.subr.mxu0 0.0
  %143 = vmatpush1.msra.mxu0 0.0
  %144 = vmatprep.subr.mxu0 0.0
  %145 = vmatpush1.msra.mxu0 0.0
  %146 = vmatprep.subr.mxu0 0.0
  %147 = vmatpush1.msra.mxu0 0.0
  %148 = vmatprep.subr.mxu0 0.0
  %149 = vmatpush1.msra.mxu0 0.0
  %150 = vmatprep.subr.mxu0 0.0
  %151 = vmatpush1.msra.mxu0 %v133
  %152 = vmatprep.subr.mxu0 0.0
  %153 = vmatpush1.msra.mxu0 %v132
  %154 = vmatprep.subr.mxu0 0.0
  %155 = vmatpush1.msra.mxu0 %v131
  %156 = vmatprep.subr.mxu0 0.0
  %157 = vmatpush1.msra.mxu0 %v130
  %158 = vmatprep.subr.mxu0 0.0
  %159 = vmatpush1.msra.mxu0 %v129
  %160 = vmatprep.subr.mxu0 0.0
  %161 = vmatpush1.msra.mxu0 %v128
  %162 = vmatprep.subr.mxu0 0.0
  %163 = vmatpush1.msra.mxu0 %v127
  %164 = vmatprep.subr.mxu0 0.0
  %165 = vmatpush1.msra.mxu0 %v126
  %166 = vmatprep.subr.mxu0 0.0
  %167 = vmatpush2.msra.mxu0 0.0
  %168 = vmatprep.subr.mxu0 0.0
  %169 = vmatpush2.msra.mxu0 0.0
  %170 = vmatprep.subr.mxu0 0.0
  %171 = vmatpush2.msra.mxu0 0.0
  %172 = vmatprep.subr.mxu0 0.0
  %173 = vmatpush2.msra.mxu0 0.0
  %174 = vmatprep.subr.mxu0 0.0
  %175 = vmatpush2.msra.mxu0 0.0
  %176 = vmatprep.subr.mxu0 0.0
  %177 = vmatpush2.msra.mxu0 0.0
  %178 = vmatprep.subr.mxu0 0.0
  %179 = vmatpush2.msra.mxu0 0.0
  %180 = vmatprep.subr.mxu0 0.0
  %181 = vmatpush2.msra.mxu0 0.0
  %182 = vmatprep.subr.mxu0 0.0
  %183 = vmatpush2.msra.mxu0 0.0
  %184 = vmatprep.subr.mxu0 0.0
  %185 = vmatpush2.msra.mxu0 0.0
  %186 = vmatprep.subr.mxu0 0.0
  %187 = vmatpush2.msra.mxu0 0.0
  %188 = vmatprep.subr.mxu0 0.0
  %189 = vmatpush2.msra.mxu0 0.0
  %190 = vmatprep.subr.mxu0 0.0
  %191 = vmatpush2.msra.mxu0 0.0
  %192 = vmatprep.subr.mxu0 0.0
  %193 = vmatpush2.msra.mxu0 0.0
  %194 = vmatprep.subr.mxu0 0.0
  %195 = vmatpush2.msra.mxu0 0.0
  %196 = vmatprep.subr.mxu0 0.0
  %197 = vmatpush2.msra.mxu0 0.0
  %198 = vmatprep.mubr.f32.mxu0 0.0
  %199 = vmatmul.mubr.f32.gmra.mxu0 %v29
  %v200 = vpop.f32.mrf.mxu0
  %v201 = vadd.f32 0.0, %v200
  %v202 = vpop.f32.mrf.mxu0
  %203 = vmatprep.mubr.f32.mxu0 0.0
  %204 = vmatmul.mubr.f32.gmra.mxu0 %v32
  %v205 = vpop.f32.mrf.mxu0
  %v206 = vadd.f32 0.0, %v205
  %v207 = vpop.f32.mrf.mxu0
  %208 = vmatprep.mubr.f32.mxu0 0.0
  %209 = vmatmul.mubr.f32.gmra.mxu0 %v35
  %v210 = vpop.f32.mrf.mxu0
  %v211 = vadd.f32 0.0, %v210
  %v212 = vpop.f32.mrf.mxu0
  %213 = vmatprep.mubr.f32.mxu0 0.0
  %214 = vmatmul.mubr.f32.gmra.mxu0 %v38
  %v215 = vpop.f32.mrf.mxu0
  %v216 = vadd.f32 0.0, %v215
  %v217 = vpop.f32.mrf.mxu0
  %218 = vdwg.mxu0
  %s219 = scalar_lea.vmem %s1, 128
  %v220 = vld [vmem:[%s219] sm:$0xff]
  %v221 = vld [vmem:[%s219 + $0x8] sm:$0xff]
  %v222 = vld [vmem:[%s219 + $0x10] sm:$0xff]
  %v223 = vld [vmem:[%s219 + $0x18] sm:$0xff]
  %v224 = vld [vmem:[%s219 + $0x20] sm:$0xff]
  %v225 = vld [vmem:[%s219 + $0x28] sm:$0xff]
  %v226 = vld [vmem:[%s219 + $0x30] sm:$0xff]
  %v227 = vld [vmem:[%s219 + $0x38] sm:$0xff]
  %228 = vmatprep.subr.mxu0 0.0
  %229 = vmatpush1.msra.mxu0 0.0
  %230 = vmatprep.subr.mxu0 0.0
  %231 = vmatpush1.msra.mxu0 0.0
  %232 = vmatprep.subr.mxu0 0.0
  %233 = vmatpush1.msra.mxu0 0.0
  %234 = vmatprep.subr.mxu0 0.0
  %235 = vmatpush1.msra.mxu0 0.0
  %236 = vmatprep.subr.mxu0 0.0
  %237 = vmatpush1.msra.mxu0 0.0
  %238 = vmatprep.subr.mxu0 0.0
  %239 = vmatpush1.msra.mxu0 0.0
  %240 = vmatprep.subr.mxu0 0.0
  %241 = vmatpush1.msra.mxu0 0.0
  %242 = vmatprep.subr.mxu0 0.0
  %243 = vmatpush1.msra.mxu0 0.0
  %244 = vmatprep.subr.mxu0 0.0
  %245 = vmatpush1.msra.mxu0 %v227
  %246 = vmatprep.subr.mxu0 0.0
  %247 = vmatpush1.msra.mxu0 %v226
  %248 = vmatprep.subr.mxu0 0.0
  %249 = vmatpush1.msra.mxu0 %v225
  %250 = vmatprep.subr.mxu0 0.0
  %251 = vmatpush1.msra.mxu0 %v224
  %252 = vmatprep.subr.mxu0 0.0
  %253 = vmatpush1.msra.mxu0 %v223
  %254 = vmatprep.subr.mxu0 0.0
  %255 = vmatpush1.msra.mxu0 %v222
  %256 = vmatprep.subr.mxu0 0.0
  %257 = vmatpush1.msra.mxu0 %v221
  %258 = vmatprep.subr.mxu0 0.0
  %259 = vmatpush1.msra.mxu0 %v220
  %260 = vmatprep.subr.mxu0 0.0
  %261 = vmatpush2.msra.mxu0 0.0
  %262 = vmatprep.subr.mxu0 0.0
  %263 = vmatpush2.msra.mxu0 0.0
  %264 = vmatprep.subr.mxu0 0.0
  %265 = vmatpush2.msra.mxu0 0.0
  %266 = vmatprep.subr.mxu0 0.0
  %267 = vmatpush2.msra.mxu0 0.0
  %268 = vmatprep.subr.mxu0 0.0
  %269 = vmatpush2.msra.mxu0 0.0
  %270 = vmatprep.subr.mxu0 0.0
  %271 = vmatpush2.msra.mxu0 0.0
  %272 = vmatprep.subr.mxu0 0.0
  %273 = vmatpush2.msra.mxu0 0.0
  %274 = vmatprep.subr.mxu0 0.0
  %275 = vmatpush2.msra.mxu0 0.0
  %276 = vmatprep.subr.mxu0 0.0
  %277 = vmatpush2.msra.mxu0 0.0
  %278 = vmatprep.subr.mxu0 0.0
  %279 = vmatpush2.msra.mxu0 0.0
  %280 = vmatprep.subr.mxu0 0.0
  %281 = vmatpush2.msra.mxu0 0.0
  %282 = vmatprep.subr.mxu0 0.0
  %283 = vmatpush2.msra.mxu0 0.0
  %284 = vmatprep.subr.mxu0 0.0
  %285 = vmatpush2.msra.mxu0 0.0
  %286 = vmatprep.subr.mxu0 0.0
  %287 = vmatpush2.msra.mxu0 0.0
  %288 = vmatprep.subr.mxu0 0.0
  %289 = vmatpush2.msra.mxu0 0.0
  %290 = vmatprep.subr.mxu0 0.0
  %291 = vmatpush2.msra.mxu0 0.0
  %292 = vmatprep.mubr.f32.mxu0 0.0
  %293 = vmatmul.mubr.f32.gmra.mxu0 %v29
  %v294 = vpop.f32.mrf.mxu0
  %v295 = vadd.f32 0.0, %v294
  %v296 = vpop.f32.mrf.mxu0
  %297 = vmatprep.mubr.f32.mxu0 0.0
  %298 = vmatmul.mubr.f32.gmra.mxu0 %v32
  %v299 = vpop.f32.mrf.mxu0
  %v300 = vadd.f32 0.0, %v299
  %v301 = vpop.f32.mrf.mxu0
  %302 = vmatprep.mubr.f32.mxu0 0.0
  %303 = vmatmul.mubr.f32.gmra.mxu0 %v35
  %v304 = vpop.f32.mrf.mxu0
  %v305 = vadd.f32 0.0, %v304
  %v306 = vpop.f32.mrf.mxu0
  %307 = vmatprep.mubr.f32.mxu0 0.0
  %308 = vmatmul.mubr.f32.gmra.mxu0 %v38
  %v309 = vpop.f32.mrf.mxu0
  %v310 = vadd.f32 0.0, %v309
  %v311 = vpop.f32.mrf.mxu0
  %312 = vdwg.mxu0
  %v313 = vlaneseq
  %v314 = vshrl.u32 %v313, 7
  %v315 = vadd.s32 %v314, 8
  %v316 = vadd.s32 %v314, 16
  %v317 = vadd.s32 %v314, 24
  %vm318 = vcmp.lt.s32.totalorder %v314, 0
  %v319 = vsub.s32 0, %v314
  %v320 = vsel %vm318, %v319, %v314
  %v321 = vshrl.u32 %v320, 4
  %v322 = vand.u32 %v320, 15
  %v323 = vsub.s32 0, %v322
  %v324 = vsel %vm318, %v323, %v322
  %vm325 = vcmp.lt.s32.totalorder %v315, 0
  %v326 = vsub.s32 0, %v315
  %v327 = vsel %vm325, %v326, %v315
  %v328 = vshrl.u32 %v327, 4
  %v329 = vand.u32 %v327, 15
  %v330 = vsub.s32 0, %v329
  %v331 = vsel %vm325, %v330, %v329
  %vm332 = vcmp.lt.s32.totalorder %v316, 0
  %v333 = vsub.s32 0, %v316
  %v334 = vsel %vm332, %v333, %v316
  %v335 = vshrl.u32 %v334, 4
  %v336 = vand.u32 %v334, 15
  %v337 = vsub.s32 0, %v336
  %v338 = vsel %vm332, %v337, %v336
  %vm339 = vcmp.lt.s32.totalorder %v317, 0
  %v340 = vsub.s32 0, %v317
  %v341 = vsel %vm339, %v340, %v317
  %v342 = vshrl.u32 %v341, 4
  %v343 = vand.u32 %v341, 15
  %v344 = vsub.s32 0, %v343
  %v345 = vsel %vm339, %v344, %v343
  %vm346 = vcmp.ne.s32.totalorder %v324, 0
  %vm347 = vcmp.ne.s32.totalorder %v331, 0
  %vm348 = vcmp.ne.s32.totalorder %v338, 0
  %vm349 = vcmp.ne.s32.totalorder %v345, 0
  %vm350 = vcmp.lt.s32.totalorder %v324, 0
  %vm351 = vcmp.lt.s32.totalorder %v331, 0
  %vm352 = vcmp.lt.s32.totalorder %v338, 0
  %vm353 = vcmp.lt.s32.totalorder %v345, 0
  %vm354 = vmand %vm350, %vm346
  %vm355 = vmand %vm351, %vm347
  %vm356 = vmand %vm352, %vm348
  %vm357 = vmand %vm353, %vm349
  %v358 = vadd.s32 %v324, 16
  %v359 = vadd.s32 %v331, 16
  %v360 = vadd.s32 %v338, 16
  %v361 = vadd.s32 %v345, 16
  %v362 = vsel %vm354, %v358, %v324
  %v363 = vsel %vm355, %v359, %v331
  %v364 = vsel %vm356, %v360, %v338
  %v365 = vsel %vm357, %v361, %v345
  %vm366 = vcmp.eq.s32.totalorder %v362, 0
  %vm367 = vcmp.eq.s32.totalorder %v363, 0
  %vm368 = vcmp.eq.s32.totalorder %v364, 0
  %vm369 = vcmp.eq.s32.totalorder %v365, 0
  %v370 = vrot.slane %v107, 7
  %v371 = vrot.slane %v112, 7
  %v372 = vrot.slane %v117, 7
  %v373 = vrot.slane %v122, 7
  %vm374 = vcmp.lt.s32.totalorder %v314, 1
  %v375 = vsel %vm374, %v372, %v373
  %v376 = vsel %vm374, %v371, %v372
  %v377 = vsel %vm374, %v370, %v371
  %v378 = vsel %vm374, %v373, %v370
  %v379 = vsel %vm366, %v107, %v378
  %v380 = vsel %vm367, %v112, %v377
  %v381 = vsel %vm368, %v117, %v376
  %v382 = vsel %vm369, %v122, %v375
  %vm383 = vcmp.eq.s32.totalorder %v362, 15
  %vm384 = vcmp.eq.s32.totalorder %v363, 15
  %vm385 = vcmp.eq.s32.totalorder %v364, 15
  %vm386 = vcmp.eq.s32.totalorder %v365, 15
  %v387 = vrot.slane %v295, 1
  %v388 = vrot.slane %v300, 1
  %v389 = vrot.slane %v305, 1
  %v390 = vrot.slane %v310, 1
  %vm391 = vcmp.lt.s32.totalorder %v314, 7
  %v392 = vsel %vm391, %v389, %v390
  %v393 = vsel %vm391, %v388, %v389
  %v394 = vsel %vm391, %v387, %v388
  %v395 = vsel %vm391, %v390, %v387
  %v396 = vsel %vm383, %v295, %v394
  %v397 = vsel %vm384, %v300, %v393
  %v398 = vsel %vm385, %v305, %v392
  %v399 = vsel %vm386, %v310, %v395
  %v400 = vadd.f32 %v379, %v201
  %v401 = vadd.f32 %v380, %v206
  %v402 = vadd.f32 %v381, %v211
  %v403 = vadd.f32 %v382, %v216
  %v404 = vadd.f32 %v400, %v396
  %v405 = vadd.f32 %v401, %v397
  %v406 = vadd.f32 %v402, %v398
  %v407 = vadd.f32 %v403, %v399
  %v409 = vlaneseq
  %v410 = vshrl.u32 %v409, 7
  %v411 = vsub.s32 0, %v410
  %v412 = vrot.slane %v18, %v411
  %v414 = vadd.f32 %v404, %v412
  %v415 = vadd.f32 %v405, %v412
  %v416 = vadd.f32 %v406, %v412
  %v417 = vadd.f32 %v407, %v412
  %v418 = vmax.f32 %v414, 0.0
  %v419 = vmax.f32 %v415, 0.0
  %v420 = vmax.f32 %v416, 0.0
  %v421 = vmax.f32 %v417, 0.0
  %422 = vst [vmem:[%s3] sm:$0xff] %v418
  %423 = vst [vmem:[%s3 + $0x8] sm:$0xff] %v419
  %424 = vst [vmem:[%s3 + $0x10] sm:$0xff] %v420
  %425 = vst [vmem:[%s3 + $0x18] sm:$0xff] %v421
  // Predicated region
  $region14: #{preprocess_pallas.1} parent=0 // pred_check
    _
  $region15: #{preprocess_pallas.1} parent=0 // pred_check_branch
    %427 = sbr.rel (0) target = $region17
  $region16: #{preprocess_pallas.1} parent=0 // pred_region
    _
  $region17: #{preprocess_pallas.1} parent=0 // pred_fallthru
    _
  // Predicated region
  $region18: #{preprocess_pallas.1} parent=0 // pred_check
    _
  $region19: #{preprocess_pallas.1} parent=0 // pred_check_branch
    %429 = sbr.rel (0) target = $region21
  $region20: #{preprocess_pallas.1} parent=0 // pred_region
    _
  $region21: #{preprocess_pallas.1} parent=0 // pred_fallthru
    _

</llo_original>
